<compile_context>
chip_gen: v6e
topology: v6e:2x2x1
jax: 0.10.0
libtpu: 0.0.40
codegen_flags: <defaults>
</compile_context>

<pallas_src>
import functools
import math

import jax
import jax.numpy as jnp
from jax.experimental import pallas as pl
from jax.experimental.pallas import tpu as pltpu

_MIB = 1024 * 1024


def _ceil_div(a, b):
    return -(-a // b)


def _round_down(v, m):
    return (v // m) * m


def _round_up(v, m):
    return _ceil_div(v, m) * m


# ---------------------------------------------------------------------------
# Small-S path: lane-dense flattened output (N, S*S), TB batch rows per step.
# ---------------------------------------------------------------------------
def _gaussian_mask_flat_kernel(mx_ref, my_ref, sx_ref, sy_ref, o_ref, *, S):
    _, TC = o_ref.shape                       # TC == S * S (lane-dense)
    scale = 2.0 / (S - 1)

    # Coordinate grids are batch-invariant: build them once at (1, TC); the
    # broadcast against the (TB, 1) per-row scalars happens only in dx/dy.
    if S & (S - 1) == 0:
        # Power-of-two S: integer shift/mask divmod (cheapest).
        col = jax.lax.broadcasted_iota(jnp.int32, (1, TC), 1)
        shift = int(round(math.log2(S)))
        y_idx = (col >> shift).astype(jnp.float32)
        x_idx = (col & (S - 1)).astype(jnp.float32)
    else:
        # Float multiply+floor divmod: exact for S < 128 (wrapper guard).
        inv_S = 1.0 / S
        colf = jax.lax.broadcasted_iota(jnp.int32, (1, TC), 1).astype(jnp.float32)
        y_idx = jnp.floor(colf * inv_S + 0.5 * inv_S)
        x_idx = colf - y_idx * S
    x = x_idx * scale - 1.0                   # varies along the fast (last) axis
    y = y_idx * scale - 1.0                   # varies along the middle axis

    mx = mx_ref[...]                          # (TB, 1)
    my = my_ref[...]
    sx = jnp.maximum(sx_ref[...], 0.001)      # th.clamp(min=0.001)
    sy = jnp.maximum(sy_ref[...], 0.001)
    inv_sx = 1.0 / sx                         # per-row reciprocals (hoisted)
    inv_sy = 1.0 / sy
    coeff = (inv_sx * inv_sy) * (1.0 / (2.0 * math.pi))
    rsx = inv_sx * (1.0 / math.sqrt(2.0))     # fold -0.5 into the scale
    rsy = inv_sy * (1.0 / math.sqrt(2.0))

    dx = (x - mx) * rsx                       # (TB, TC)
    dy = (y - my) * rsy
    # NOTE: padded remainder rows (N % TB != 0) compute exp() on whatever sits
    # in the padded input sublanes; those rows are masked off on store (benign).
    o_ref[...] = (coeff * jnp.exp(-(dx * dx + dy * dy))).astype(o_ref.dtype)


def _gaussian_mask_flat(mx, my, sx, sy, S, out_dtype):
    N = mx.shape[0]
    itemsize = jnp.dtype(out_dtype).itemsize
    row_bytes = S * S * itemsize
    target = 6 * _MIB                         # VMEM-budgeted output block
    if N <= 8:
        TB = N                                # full batch dim (valid block)
    else:
        TB = max(8, _round_down(target // row_bytes, 8))
        if TB >= N:
            # Budget covers everything in one step: split so both v7x
            # TensorCores get work (>= 2 grid steps).
            TB = _round_up(_ceil_div(N, 2), 8)
    block_bytes = TB * row_bytes
    vmem_limit = max(16 * _MIB, 2 * block_bytes + 4 * _MIB)

    p = lambda v: v.reshape(N, 1)
    out = pl.pallas_call(
        functools.partial(_gaussian_mask_flat_kernel, S=S),
        out_shape=jax.ShapeDtypeStruct((N, S * S), out_dtype),
        grid=(pl.cdiv(N, TB),),
        in_specs=[pl.BlockSpec((TB, 1), lambda i: (i, 0)) for _ in range(4)],
        out_specs=pl.BlockSpec((TB, S * S), lambda i: (i, 0)),
        compiler_params=pltpu.CompilerParams(
            dimension_semantics=("parallel",),
            vmem_limit_bytes=vmem_limit),
    )(p(mx), p(my), p(sx), p(sy))
    return out.reshape(N, S, S)               # row-major reshape: free


# ---------------------------------------------------------------------------
# Large-S path: separable row x column factors, row-tiled (TS, S) blocks,
# per-sample scalars in 1-D SMEM.
# ---------------------------------------------------------------------------
def _gaussian_mask_rows_kernel(mx_ref, my_ref, sx_ref, sy_ref, o_ref, *, S, TS):
    n = pl.program_id(0)
    r = pl.program_id(1)
    scale = 2.0 / (S - 1)

    mx = mx_ref[n]
    my = my_ref[n]
    inv_sx = 1.0 / jnp.maximum(sx_ref[n], 0.001)   # scalar reciprocals (hoisted)
    inv_sy = 1.0 / jnp.maximum(sy_ref[n], 0.001)
    coeff = (inv_sx * inv_sy) * (1.0 / (2.0 * math.pi))
    rsx = inv_sx * (1.0 / math.sqrt(2.0))          # fold -0.5 into the scale
    rsy = inv_sy * (1.0 / math.sqrt(2.0))

    # Separable Gaussian: (1, S) row factor and (TS, 1) column factor.
    # exp count per tile = TS + S (instead of TS * S); the per-element work
    # is a single VPU broadcast multiply + cast (kept OFF the MXU on purpose).
    x_idx = jax.lax.broadcasted_iota(jnp.int32, (1, S), 1).astype(jnp.float32)
    y_idx = (jax.lax.broadcasted_iota(jnp.int32, (TS, 1), 0)
             + r * TS).astype(jnp.float32)
    dx = (x_idx * scale - 1.0 - mx) * rsx          # (1, S)
    dy = (y_idx * scale - 1.0 - my) * rsy          # (TS, 1)
    fx = coeff * jnp.exp(-(dx * dx))               # (1, S): carries 1/(2*pi*sx*sy)
    fy = jnp.exp(-(dy * dy))                       # (TS, 1)

    o_ref[...] = (fy * fx).astype(o_ref.dtype)     # one multiply + cast / element


def _gaussian_mask_rows(mx, my, sx, sy, S, out_dtype):
    N = mx.shape[0]
    itemsize = jnp.dtype(out_dtype).itemsize
    sub = 8 if itemsize >= 4 else 16               # sublane granularity (bf16: 16)
    target = 8 * _MIB                              # block safe for v7x 64 MiB VMEM
    if S * S * itemsize <= target:
        TS = S
    else:
        TS = max(sub, _round_down(target // (S * itemsize), sub))
    if N == 1 and TS >= S and S > sub:
        # Single-sample, single-tile grid would idle one v7x TensorCore:
        # force >= 2 row tiles.
        TS = max(sub, _round_down(_ceil_div(S, 2), sub))
    TS = min(TS, S)
    block_bytes = TS * S * itemsize
    vmem_limit = max(16 * _MIB, 2 * block_bytes + 4 * _MIB)

    smem = lambda: pl.BlockSpec(memory_space=pltpu.SMEM)
    return pl.pallas_call(
        functools.partial(_gaussian_mask_rows_kernel, S=S, TS=TS),
        out_shape=jax.ShapeDtypeStruct((N, S, S), out_dtype),
        grid=(N, pl.cdiv(S, TS)),
        in_specs=[smem() for _ in range(4)],
        out_specs=pl.BlockSpec((None, TS, S), lambda n, r: (n, r, 0)),
        compiler_params=pltpu.CompilerParams(
            dimension_semantics=("parallel", "parallel"),
            vmem_limit_bytes=vmem_limit),
    )(mx, my, sx, sy)


# ---------------------------------------------------------------------------
# Public wrapper (equivalent of GaussianMask(width, height).forward(...)).
# ---------------------------------------------------------------------------
def gaussian_mask(mx, my, sx, sy, width, height, *, out_dtype=jnp.float32):
    assert width == height, "original module's expand() requires width == height"
    S = width
    assert S >= 2
    N = mx.shape[0]
    f = lambda v: jnp.asarray(v, jnp.float32).reshape(N)
    mx, my, sx, sy = f(mx), f(my), f(sx), f(sy)
    if S < 128:
        # Small-S: lane-dense flattened output (full-width unmasked stores).
        return _gaussian_mask_flat(mx, my, sx, sy, S, out_dtype)
    # Large-S: separable row-tiled kernel, HBM-writeback bound.
    return _gaussian_mask_rows(mx, my, sx, sy, S, out_dtype)


def gaussian_mask_reference(mx, my, sx, sy, S):
    """Plain-JAX transcription of the PyTorch forward, for verification."""
    xs = jnp.linspace(-1.0, 1.0, S, dtype=jnp.float32)
    N = mx.shape[0]
    x = jnp.broadcast_to(xs[None, None, :], (N, S, S))
    y = jnp.broadcast_to(xs[None, :, None], (N, S, S))
    mxe = mx.reshape(N, 1, 1)
    mye = my.reshape(N, 1, 1)
    sxe = jnp.maximum(sx, 0.001).reshape(N, 1, 1)
    sye = jnp.maximum(sy, 0.001).reshape(N, 1, 1)
    z = ((x - mxe) / sxe) ** 2 + ((y - mye) / sye) ** 2
    return 1.0 / (2.0 * math.pi * sxe * sye) * jnp.exp(-z / 2.0)


if __name__ == "__main__":
    N = 2
    WIDTH = HEIGHT = 16

    key = jax.random.PRNGKey(0)
    k1, k2, k3, k4 = jax.random.split(key, 4)
    mx = jax.random.uniform(k1, (N, 1), jnp.float32, minval=-1.0, maxval=1.0)
    my = jax.random.uniform(k2, (N, 1), jnp.float32, minval=-1.0, maxval=1.0)
    sx = jax.random.uniform(k3, (N, 1), jnp.float32, minval=0.05, maxval=0.8)
    sy = jax.random.uniform(k4, (N, 1), jnp.float32, minval=0.05, maxval=0.8)

    ref = gaussian_mask_reference(mx, my, sx, sy, WIDTH)

    # 1) Main path: small-S lane-dense flattened kernel (pow-2 divmod branch).
    out = gaussian_mask(mx, my, sx, sy, WIDTH, HEIGHT)
    out = jax.block_until_ready(out)
    assert out.shape == (N, WIDTH, HEIGHT)
    assert bool(jnp.allclose(out, ref, rtol=1e-5, atol=1e-5))

    # 2) Non-power-of-two small S exercises the float divmod branch.
    S2 = 12
    ref12 = gaussian_mask_reference(mx, my, sx, sy, S2)
    out12 = jax.block_until_ready(gaussian_mask(mx, my, sx, sy, S2, S2))
    assert out12.shape == (N, S2, S2)
    assert bool(jnp.allclose(out12, ref12, rtol=1e-5, atol=1e-5))

    # 3) Separable row-tiled (large-S) kernel at the same small shape.
    g = lambda v: v.reshape(N).astype(jnp.float32)
    out_rows = _gaussian_mask_rows(g(mx), g(my), g(sx), g(sy), WIDTH, jnp.float32)
    out_rows = jax.block_until_ready(out_rows)
    assert out_rows.shape == (N, WIDTH, HEIGHT)
    assert bool(jnp.allclose(out_rows, ref, rtol=1e-5, atol=1e-5))

    # 4) Row-tiled kernel with N == 1 (forces the >=2-row-tile megacore split).
    ref1 = gaussian_mask_reference(mx[:1], my[:1], sx[:1], sy[:1], WIDTH)
    out1 = _gaussian_mask_rows(g(mx)[:1], g(my)[:1], g(sx)[:1], g(sy)[:1],
                               WIDTH, jnp.float32)
    out1 = jax.block_until_ready(out1)
    assert out1.shape == (1, WIDTH, HEIGHT)
    assert bool(jnp.allclose(out1, ref1, rtol=1e-5, atol=1e-5))

    print("KERNEL_OK")
</pallas_src>

<mosaic_0001>
module attributes {stable_mosaic.version = 11 : i64} {
  func.func @_gaussian_mask_flat_kernel(%arg0: i32, %arg1: memref<2x1xf32, #tpu.memory_space<vmem>>, %arg2: memref<2x1xf32, #tpu.memory_space<vmem>>, %arg3: memref<2x1xf32, #tpu.memory_space<vmem>>, %arg4: memref<2x1xf32, #tpu.memory_space<vmem>>, %arg5: memref<2x256xf32, #tpu.memory_space<vmem>>) attributes {dimension_semantics = [#tpu.dimension_semantics<parallel>], iteration_bounds = array<i64: 1>, scalar_prefetch = 0 : i64, scratch_operands = 0 : i64, tpu.core_type = #tpu.core_type<tc>, window_params = [{transform_indices = @transform_0, window_bounds = array<i64: 2, 1>}, {transform_indices = @transform_1, window_bounds = array<i64: 2, 1>}, {transform_indices = @transform_2, window_bounds = array<i64: 2, 1>}, {transform_indices = @transform_3, window_bounds = array<i64: 2, 1>}, {transform_indices = @transform_4, window_bounds = array<i64: 2, 256>}]} {
    %0 = tpu.iota {dimensions = array<i32: 1>} : vector<1x256xi32>
    %c4_i32 = arith.constant 4 : i32
    %1 = vector.broadcast %c4_i32 : i32 to vector<1x256xi32>
    %2 = arith.shrsi %0, %1 : vector<1x256xi32>
    %3 = arith.sitofp %2 : vector<1x256xi32> to vector<1x256xf32>
    %c15_i32 = arith.constant 15 : i32
    %4 = vector.broadcast %c15_i32 : i32 to vector<1x256xi32>
    %5 = arith.andi %0, %4 : vector<1x256xi32>
    %6 = arith.sitofp %5 : vector<1x256xi32> to vector<1x256xf32>
    %cst = arith.constant 0.13333334 : f32
    %7 = vector.broadcast %cst : f32 to vector<1x256xf32>
    %8 = arith.mulf %6, %7 : vector<1x256xf32>
    %cst_0 = arith.constant 1.000000e+00 : f32
    %9 = vector.broadcast %cst_0 : f32 to vector<1x256xf32>
    %10 = arith.subf %8, %9 : vector<1x256xf32>
    %cst_1 = arith.constant 0.13333334 : f32
    %11 = vector.broadcast %cst_1 : f32 to vector<1x256xf32>
    %12 = arith.mulf %3, %11 : vector<1x256xf32>
    %cst_2 = arith.constant 1.000000e+00 : f32
    %13 = vector.broadcast %cst_2 : f32 to vector<1x256xf32>
    %14 = arith.subf %12, %13 : vector<1x256xf32>
    %c0 = arith.constant 0 : index
    %c0_3 = arith.constant 0 : index
    %15 = vector.load %arg1[%c0, %c0_3] : memref<2x1xf32, #tpu.memory_space<vmem>>, vector<2x1xf32>
    %c0_4 = arith.constant 0 : index
    %c0_5 = arith.constant 0 : index
    %16 = vector.load %arg2[%c0_4, %c0_5] : memref<2x1xf32, #tpu.memory_space<vmem>>, vector<2x1xf32>
    %c0_6 = arith.constant 0 : index
    %c0_7 = arith.constant 0 : index
    %17 = vector.load %arg3[%c0_6, %c0_7] : memref<2x1xf32, #tpu.memory_space<vmem>>, vector<2x1xf32>
    %cst_8 = arith.constant 1.000000e-03 : f32
    %18 = vector.broadcast %cst_8 : f32 to vector<2x1xf32>
    %19 = arith.maximumf %17, %18 : vector<2x1xf32>
    %c0_9 = arith.constant 0 : index
    %c0_10 = arith.constant 0 : index
    %20 = vector.load %arg4[%c0_9, %c0_10] : memref<2x1xf32, #tpu.memory_space<vmem>>, vector<2x1xf32>
    %cst_11 = arith.constant 1.000000e-03 : f32
    %21 = vector.broadcast %cst_11 : f32 to vector<2x1xf32>
    %22 = arith.maximumf %20, %21 : vector<2x1xf32>
    %cst_12 = arith.constant 1.000000e+00 : f32
    %23 = vector.broadcast %cst_12 : f32 to vector<2x1xf32>
    %24 = arith.divf %23, %19 : vector<2x1xf32>
    %cst_13 = arith.constant 1.000000e+00 : f32
    %25 = vector.broadcast %cst_13 : f32 to vector<2x1xf32>
    %26 = arith.divf %25, %22 : vector<2x1xf32>
    %27 = arith.mulf %24, %26 : vector<2x1xf32>
    %cst_14 = arith.constant 0.159154937 : f32
    %28 = vector.broadcast %cst_14 : f32 to vector<2x1xf32>
    %29 = arith.mulf %27, %28 : vector<2x1xf32>
    %cst_15 = arith.constant 0.707106769 : f32
    %30 = vector.broadcast %cst_15 : f32 to vector<2x1xf32>
    %31 = arith.mulf %24, %30 : vector<2x1xf32>
    %cst_16 = arith.constant 0.707106769 : f32
    %32 = vector.broadcast %cst_16 : f32 to vector<2x1xf32>
    %33 = arith.mulf %26, %32 : vector<2x1xf32>
    %34 = vector.broadcast %10 : vector<1x256xf32> to vector<2x256xf32>
    %35 = vector.broadcast %15 : vector<2x1xf32> to vector<2x256xf32>
    %36 = arith.subf %34, %35 : vector<2x256xf32>
    %37 = vector.broadcast %31 : vector<2x1xf32> to vector<2x256xf32>
    %38 = arith.mulf %36, %37 : vector<2x256xf32>
    %39 = vector.broadcast %14 : vector<1x256xf32> to vector<2x256xf32>
    %40 = vector.broadcast %16 : vector<2x1xf32> to vector<2x256xf32>
    %41 = arith.subf %39, %40 : vector<2x256xf32>
    %42 = vector.broadcast %33 : vector<2x1xf32> to vector<2x256xf32>
    %43 = arith.mulf %41, %42 : vector<2x256xf32>
    %44 = arith.mulf %38, %38 : vector<2x256xf32>
    %45 = arith.mulf %43, %43 : vector<2x256xf32>
    %46 = arith.addf %44, %45 : vector<2x256xf32>
    %cst_17 = arith.constant 0.000000e+00 : f32
    %47 = vector.broadcast %cst_17 : f32 to vector<2x256xf32>
    %48 = arith.subf %47, %46 : vector<2x256xf32>
    %49 = math.exp %48 : vector<2x256xf32>
    %50 = vector.broadcast %29 : vector<2x1xf32> to vector<2x256xf32>
    %51 = arith.mulf %50, %49 : vector<2x256xf32>
    %c0_18 = arith.constant 0 : index
    %c0_19 = arith.constant 0 : index
    %52 = vector.load %arg5[%c0_18, %c0_19] : memref<2x256xf32, #tpu.memory_space<vmem>>, vector<2x256xf32>
    tpu.vector_store %arg5[%c0_18, %c0_19], %51 {strides = array<i32>} : memref<2x256xf32, #tpu.memory_space<vmem>>, vector<2x256xf32>,
    return
  }
  func.func @transform_0(%arg0: i32) -> (i32, i32) {
    %c0_i32 = arith.constant 0 : i32
    %c0_i32_0 = arith.constant 0 : i32
    return %arg0, %c0_i32 : i32, i32
  }
  func.func @transform_1(%arg0: i32) -> (i32, i32) {
    %c0_i32 = arith.constant 0 : i32
    %c0_i32_0 = arith.constant 0 : i32
    return %arg0, %c0_i32 : i32, i32
  }
  func.func @transform_2(%arg0: i32) -> (i32, i32) {
    %c0_i32 = arith.constant 0 : i32
    %c0_i32_0 = arith.constant 0 : i32
    return %arg0, %c0_i32 : i32, i32
  }
  func.func @transform_3(%arg0: i32) -> (i32, i32) {
    %c0_i32 = arith.constant 0 : i32
    %c0_i32_0 = arith.constant 0 : i32
    return %arg0, %c0_i32 : i32, i32
  }
  func.func @transform_4(%arg0: i32) -> (i32, i32) {
    %c0_i32 = arith.constant 0 : i32
    %c0_i32_0 = arith.constant 0 : i32
    return %arg0, %c0_i32 : i32, i32
  }
}

</mosaic_0001>

<llo_original>
// kernel: tpu_custom_call.1
$region0: #{tpu_custom_call.1}
  #allocation0 [shape = 'u32[]', space=smem, size = 0x4, offset = 0x4, fixed_abs, tag = 'smem constant byte address 0x4 - core index']
  #allocation1 [shape = 'u32[144,128]{1,0:T(1,128)}', space=vmem, size = 0x12000, scoped, tag = 'internal scratch']
  %s0 = inlined_call_operand.vmem [shape: f32[2,1], index: 0, kind: input, shape index: {}]
  %s1 = inlined_call_operand.vmem [shape: f32[2,1], index: 1, kind: input, shape index: {}]
  %s2 = inlined_call_operand.vmem [shape: f32[2,1], index: 2, kind: input, shape index: {}]
  %s3 = inlined_call_operand.vmem [shape: f32[2,1], index: 3, kind: input, shape index: {}]
  %s4 = inlined_call_operand.hbm [shape: f32[2,256], index: 4, kind: output, shape index: {}]
  %s5 = sld [smem:[#allocation0]]
  $region26: #{tpu_custom_call.1} parent=0
    _
  %s7 = ssub.s32 1, %s5
  %s8 = scalar_select 0, %s7, %s5
  $region1: #{tpu_custom_call.1} parent=0
    #allocation2 [shape = 'u8[2048]{0}', space=vmem, size = 0x800, scoped, tag = 'output window, operand 0, single buffered']
    #allocation3 [shape = 's32[1]{0}', space=sflag, size = 0x4, scoped, tag = 'scoped memory for tpu_custom_call.1']
    %9 = vsyncpa [#allocation3], 0
    // Predicated region
    $region2: #{tpu_custom_call.1} parent=1 // pred_check
      _
    $region3: #{tpu_custom_call.1} parent=1 // pred_check_branch
      %11 = sbr.rel (0) target = $region5
    $region4: #{tpu_custom_call.1} parent=1 // pred_region
      _
    $region5: #{tpu_custom_call.1} parent=1 // pred_fallthru
      _
    // Predicated region
    $region6: #{tpu_custom_call.1} parent=1 // pred_check
      _
    $region7: #{tpu_custom_call.1} parent=1 // pred_check_branch
      %13 = sbr.rel (0) target = $region9
    $region8: #{tpu_custom_call.1} parent=1 // pred_region
      _
    $region9: #{tpu_custom_call.1} parent=1 // pred_fallthru
      _
    // Predicated region
    $region10: #{tpu_custom_call.1} parent=1 // pred_check
      _
    $region11: #{tpu_custom_call.1} parent=1 // pred_check_branch
      %15 = sbr.rel (0) target = $region13
    $region12: #{tpu_custom_call.1} parent=1 // pred_region
      _
    $region13: #{tpu_custom_call.1} parent=1 // pred_fallthru
      _
    // Predicated region
    $region14: #{tpu_custom_call.1} parent=1 // pred_check
      _
    $region15: #{tpu_custom_call.1} parent=1 // pred_check_branch
      %17 = sbr.rel (0) target = $region17
    $region16: #{tpu_custom_call.1} parent=1 // pred_region
      _
    $region17: #{tpu_custom_call.1} parent=1 // pred_fallthru
      _
    %v18 = vlaneseq
    %v19 = vand.u32 %v18, 127
    %v20 = vadd.s32 %v19, 128
    %v21 = vshra.s32 %v19, 4
    %v22 = vshra.s32 %v20, 4
    %v23 = vcvt.s32.f32 %v21
    %v24 = vcvt.s32.f32 %v22
    %v25 = vand.u32 %v19, 15
    %v26 = vand.u32 %v20, 15
    %v27 = vcvt.s32.f32 %v25
    %v28 = vcvt.s32.f32 %v26
    %v29 = vmul.f32 %v27, 0.13333334
    %v30 = vmul.f32 %v28, 0.13333334
    %v31 = vsub.f32 %v29, 1.0
    %v32 = vsub.f32 %v30, 1.0
    %v33 = vmul.f32 %v23, 0.13333334
    %v34 = vmul.f32 %v24, 0.13333334
    %v35 = vsub.f32 %v33, 1.0
    %v36 = vsub.f32 %v34, 1.0
    %v37 = vld [vmem:[%s0] sm:$0x3]
    %v38 = vld [vmem:[%s1] sm:$0x3]
    %v39 = vld [vmem:[%s2] sm:$0x3]
    %v40 = vmax.f32 %v39, 0.001
    %v41 = vld [vmem:[%s3] sm:$0x3]
    %v42 = vmax.f32 %v41, 0.001
    %v43 = vrcp.pop %v40
    %v44 = vmul.f32 1.0, %v43
    %v45 = vrcp.pop %v42
    %v46 = vmul.f32 1.0, %v45
    %v47 = vmul.f32 %v44, %v46
    %v48 = vmul.f32 %v47, 0.15915494
    %v49 = vmul.f32 %v44, 0.70710677
    %v50 = vmul.f32 %v46, 0.70710677
    %52 = vset.pattern.permute.xlu0 0
    %53 = vperm.xlu0 %52, %v37
    %v54 = vpop.permute.xlu0 %53
    %v56 = vsub.f32 %v31, %v54
    %v57 = vsub.f32 %v32, %v54
    %59 = vset.pattern.permute.xlu0 0
    %60 = vperm.xlu0 %59, %v49
    %v61 = vpop.permute.xlu0 %60
    %v63 = vmul.f32 %v56, %v61
    %v64 = vmul.f32 %v57, %v61
    %66 = vset.pattern.permute.xlu0 0
    %67 = vperm.xlu0 %66, %v38
    %v68 = vpop.permute.xlu0 %67
    %v70 = vsub.f32 %v35, %v68
    %v71 = vsub.f32 %v36, %v68
    %73 = vset.pattern.permute.xlu0 0
    %74 = vperm.xlu0 %73, %v50
    %v75 = vpop.permute.xlu0 %74
    %v77 = vmul.f32 %v70, %v75
    %v78 = vmul.f32 %v71, %v75
    %v79 = vmul.f32 %v63, %v63
    %v80 = vmul.f32 %v64, %v64
    %v81 = vmul.f32 %v77, %v77
    %v82 = vmul.f32 %v78, %v78
    %v83 = vadd.f32 %v79, %v81
    %v84 = vadd.f32 %v80, %v82
    %v85 = vsub.f32 0.0, %v83
    %v86 = vsub.f32 0.0, %v84
    %v87 = vmul.f32 %v85, 1.442695
    %v88 = vpow.pop %v87
    %v89 = vmul.f32 %v86, 1.442695
    %v90 = vpow.pop %v89
    %92 = vset.pattern.permute.xlu0 0
    %93 = vperm.xlu0 %92, %v48
    %v94 = vpop.permute.xlu0 %93
    %v96 = vmul.f32 %v94, %v88
    %v97 = vmul.f32 %v94, %v90
    %v100 = vcombine.low %v96, %v97
    %v102 = vunpack.c.l.s4 1983009808
    %v103 = vunpack.c.0.s8 %v102
    %v104 = vlaneseq
    %v105 = vshrl.u32 %v104, 7
    %v106 = vsub.s32 %v103, %v105
    %v107 = vrot.slane %v100, %v106
    %109 = vst [vmem:[#allocation2] sm:$0xf] %v107
    // Predicated region
    $region18: #{tpu_custom_call.1} parent=1 // pred_check
      _
    $region19: #{tpu_custom_call.1} parent=1 // pred_check_branch
      %111 = sbr.rel (0) target = $region21
    $region20: #{tpu_custom_call.1} parent=1 // pred_region
      %s113 = ssub.s32 64, 64
      %114 = vsyncadd [#allocation3], %s113
      %s116 = sshll.u32 [#allocation2], 4
      %s117 = int_to_ptr.vmem [resolvable:$true] %s116
      %119 = dma.vmem_to_hbm [thread:$0]  %s117, 64, %s4, [#allocation3]
    $region21: #{tpu_custom_call.1} parent=1 // pred_fallthru
      _
    // Predicated region
    $region22: #{tpu_custom_call.1} parent=1 // pred_check
      _
    $region23: #{tpu_custom_call.1} parent=1 // pred_check_branch
      %121 = sbr.rel (0) target = $region25
    $region24: #{tpu_custom_call.1} parent=1 // pred_region
      %122 = dma.done [#allocation3], 64
    $region25: #{tpu_custom_call.1} parent=1 // pred_fallthru
      _
    %123 = vsyncpa [#allocation3], 1

</llo_original>
